<compile_context>
chip_gen: v5e
topology: v5e:2x2
jax: 0.10.0
libtpu: 0.0.40
codegen_flags: <defaults>
</compile_context>

<pallas_src>
import functools
import math

import jax
import jax.numpy as jnp
from jax import lax
from jax.experimental import pallas as pl
from jax.experimental.pallas import tpu as pltpu

HIDDEN = 64          # logical hidden width of the PyTorch module
HIDDEN_PAD = 128     # lane-dense padded hidden width
LANE = 128
BN_EPS = 1e-5


def _round_up(n, m):
    return ((n + m - 1) // m) * m


# ---------------------------------------------------------------------------
# Kernels
# ---------------------------------------------------------------------------
def _nobn_kernel(x_ref, w1_ref, vec_ref, w2_ref, b2_ref, o_ref):
    """Batch == 1 path: PyTorch skips BatchNorm, so b1 + ReLU + layer_out."""
    h = jnp.dot(x_ref[...].astype(jnp.bfloat16), w1_ref[...],
                preferred_element_type=jnp.float32)
    a = jnp.maximum(h + vec_ref[0:1, :], 0.0)
    o_ref[...] = (jnp.dot(a.astype(jnp.bfloat16), w2_ref[...],
                          preferred_element_type=jnp.float32) + b2_ref[...])


def _single_pass_bn_kernel(x_ref, w1_ref, vec_ref, w2_ref, b2_ref, o_ref):
    """Whole problem in one invocation: h once, BN stats, BN+ReLU+matmul2."""
    h = jnp.dot(x_ref[...].astype(jnp.bfloat16), w1_ref[...],
                preferred_element_type=jnp.float32)
    # b1 omitted: BatchNorm subtracts the batch mean, so a per-column constant
    # added before BN cancels exactly.
    inv_n = jnp.float32(1.0 / h.shape[0])
    mean = jnp.sum(h, axis=0, keepdims=True) * inv_n
    d = h - mean
    var = jnp.sum(d * d, axis=0, keepdims=True) * inv_n            # E[(h-mean)^2]
    scale = vec_ref[1:2, :] * lax.rsqrt(var + BN_EPS)               # gamma * rstd
    a = jnp.maximum(d * scale + vec_ref[2:3, :], 0.0)               # BN + ReLU
    # dropout(p=0.2) == identity (eval semantics)
    o_ref[...] = (jnp.dot(a.astype(jnp.bfloat16), w2_ref[...],
                          preferred_element_type=jnp.float32) + b2_ref[...])


def _stats_kernel(x_ref, w1_ref, h_ref, stats_ref, *, n_rows, tile_rows):
    """Tiled pass 1: h = x @ w1 (stashed as bf16) + per-tile partial stats."""
    i = pl.program_id(0)
    h = jnp.dot(x_ref[...].astype(jnp.bfloat16), w1_ref[...],
                preferred_element_type=jnp.float32)
    h_ref[...] = h.astype(jnp.bfloat16)          # stash for the apply pass
    # Mask padded rows (rows >= true batch size) out of the statistics.
    row = lax.broadcasted_iota(jnp.int32, (tile_rows, 1), 0) + i * tile_rows
    hm = jnp.where(row < n_rows, h, 0.0)
    stats_ref[...] = jnp.zeros_like(stats_ref)
    stats_ref[0:1, :] = jnp.sum(hm, axis=0, keepdims=True)          # sum h
    stats_ref[1:2, :] = jnp.sum(hm * hm, axis=0, keepdims=True)     # sum h^2


def _apply_kernel(h_ref, ss_ref, w2_ref, b2_ref, o_ref):
    """Tiled pass 2: folded BN affine + ReLU + output matmul."""
    a = jnp.maximum(h_ref[...].astype(jnp.float32) * ss_ref[0:1, :]
                    + ss_ref[1:2, :], 0.0)
    o_ref[...] = (jnp.dot(a.astype(jnp.bfloat16), w2_ref[...],
                          preferred_element_type=jnp.float32) + b2_ref[...])


# ---------------------------------------------------------------------------
# Wrapper
# ---------------------------------------------------------------------------
def _pad_params(params, F, C):
    w1, b1, gamma, beta, w2, b2 = params
    HP = HIDDEN_PAD
    CP = _round_up(C, LANE)
    w1p = jnp.zeros((F, HP), jnp.float32).at[:, :HIDDEN].set(w1).astype(jnp.bfloat16)
    w2p = jnp.zeros((HP, CP), jnp.float32).at[:HIDDEN, :C].set(w2).astype(jnp.bfloat16)
    vec = jnp.zeros((3, HP), jnp.float32)
    vec = vec.at[0, :HIDDEN].set(b1)                                 # b1    (pad 0)
    vec = vec.at[1, :].set(1.0).at[1, :HIDDEN].set(gamma)            # gamma (pad 1)
    vec = vec.at[2, :HIDDEN].set(beta)                               # beta  (pad 0)
    b2p = jnp.zeros((1, CP), jnp.float32).at[0, :C].set(b2)
    return w1p, vec, w2p, b2p, CP


def multiclass_forward(x, params, *, block_rows=512, single_pass_max_bytes=20 << 20):
    """x: (B, num_feature) float32.  Returns (B, num_class) float32 logits."""
    B, F = x.shape
    C = params[4].shape[1]
    HP = HIDDEN_PAD
    w1p, vec, w2p, b2p, CP = _pad_params(params, F, C)
    weight_bytes = F * HP * 2 + HP * CP * 2 + 3 * HP * 4 + CP * 4

    # ------------------------------------------------------------------ B == 1
    if B == 1:
        out = pl.pallas_call(
            _nobn_kernel,
            out_shape=jax.ShapeDtypeStruct((1, CP), jnp.float32),
            grid=(1,),
            in_specs=[
                pl.BlockSpec((1, F), lambda i: (0, 0)),
                pl.BlockSpec((F, HP), lambda i: (0, 0)),
                pl.BlockSpec((3, HP), lambda i: (0, 0)),
                pl.BlockSpec((HP, CP), lambda i: (0, 0)),
                pl.BlockSpec((1, CP), lambda i: (0, 0)),
            ],
            out_specs=pl.BlockSpec((1, CP), lambda i: (0, 0)),
            compiler_params=pltpu.CompilerParams(
                dimension_semantics=("arbitrary",)),
            cost_estimate=pl.CostEstimate(
                flops=2 * F * HP + 2 * HP * CP, transcendentals=0,
                bytes_accessed=F * 4 + weight_bytes + CP * 4),
        )(x, w1p, vec, w2p, b2p)
        return out[:, :C]

    # ------------------------------------------------------ single-pass (BN)
    single_bytes = (B * F * 4 + B * HP * 4 + B * HP * 2
                    + weight_bytes + B * CP * 4)
    if single_bytes <= single_pass_max_bytes:
        out = pl.pallas_call(
            _single_pass_bn_kernel,
            out_shape=jax.ShapeDtypeStruct((B, CP), jnp.float32),
            grid=(1,),
            in_specs=[
                pl.BlockSpec((B, F), lambda i: (0, 0)),     # x (f32, cast in-kernel)
                pl.BlockSpec((F, HP), lambda i: (0, 0)),    # w1 (bf16)
                pl.BlockSpec((3, HP), lambda i: (0, 0)),    # b1/gamma/beta
                pl.BlockSpec((HP, CP), lambda i: (0, 0)),   # w2 (bf16)
                pl.BlockSpec((1, CP), lambda i: (0, 0)),    # b2
            ],
            out_specs=pl.BlockSpec((B, CP), lambda i: (0, 0)),
            compiler_params=pltpu.CompilerParams(
                dimension_semantics=("arbitrary",),
                vmem_limit_bytes=int(min(56 << 20, max(32 << 20, 2 * single_bytes)))),
            cost_estimate=pl.CostEstimate(
                flops=2 * B * F * HP + 2 * B * HP * CP,
                transcendentals=HP,
                bytes_accessed=B * F * 4 + weight_bytes + B * CP * 4),
        )(x, w1p, vec, w2p, b2p)
        return out[:, :C]

    # ------------------------------------------------- tiled two-call (large B)
    TB = _round_up(max(16, min(block_rows, _round_up(B, 16))), 16)
    Bp = _round_up(B, TB)
    nb = Bp // TB
    xp = x if Bp == B else jnp.pad(x, ((0, Bp - B), (0, 0)))

    tile_bytes = (2 * TB * F * 4 + 2 * F * HP * 2 + 2 * TB * HP * 2
                  + 2 * TB * CP * 4 + HP * CP * 2 + 16 * HP * 4)
    vmem_lim = int(min(48 << 20, max(32 << 20, 2 * tile_bytes)))

    # Pass 1: h stash + per-tile partial stats (batch axis fully parallel).
    h_stash, partial = pl.pallas_call(
        functools.partial(_stats_kernel, n_rows=B, tile_rows=TB),
        out_shape=(jax.ShapeDtypeStruct((Bp, HP), jnp.bfloat16),
                   jax.ShapeDtypeStruct((nb * 8, HP), jnp.float32)),
        grid=(nb,),
        in_specs=[
            pl.BlockSpec((TB, F), lambda i: (i, 0)),
            pl.BlockSpec((F, HP), lambda i: (0, 0)),
        ],
        out_specs=(pl.BlockSpec((TB, HP), lambda i: (i, 0)),
                   pl.BlockSpec((8, HP), lambda i: (i, 0))),
        compiler_params=pltpu.CompilerParams(
            dimension_semantics=("parallel",),
            vmem_limit_bytes=vmem_lim),
        cost_estimate=pl.CostEstimate(
            flops=2 * Bp * F * HP, transcendentals=0,
            bytes_accessed=Bp * F * 4 + F * HP * 2 + Bp * HP * 2 + nb * 8 * HP * 4),
    )(xp, w1p)

    # Fold BN into a single affine (tiny wrapper-side vector math).
    part = partial.reshape(nb, 8, HP)
    sum_h = jnp.sum(part[:, 0, :], axis=0)
    sum_h2 = jnp.sum(part[:, 1, :], axis=0)
    mean = sum_h / B
    var = jnp.maximum(sum_h2 / B - mean * mean, 0.0)
    scale = vec[1] * lax.rsqrt(var + BN_EPS)
    shift = vec[2] - mean * scale
    ss = jnp.stack([scale, shift], axis=0)                  # (2, HP) f32

    # Pass 2: folded BN affine + ReLU + output matmul (batch axis parallel).
    out = pl.pallas_call(
        _apply_kernel,
        out_shape=jax.ShapeDtypeStruct((Bp, CP), jnp.float32),
        grid=(nb,),
        in_specs=[
            pl.BlockSpec((TB, HP), lambda i: (i, 0)),
            pl.BlockSpec((2, HP), lambda i: (0, 0)),
            pl.BlockSpec((HP, CP), lambda i: (0, 0)),
            pl.BlockSpec((1, CP), lambda i: (0, 0)),
        ],
        out_specs=pl.BlockSpec((TB, CP), lambda i: (i, 0)),
        compiler_params=pltpu.CompilerParams(
            dimension_semantics=("parallel",),
            vmem_limit_bytes=vmem_lim),
        cost_estimate=pl.CostEstimate(
            flops=2 * Bp * HP * CP, transcendentals=0,
            bytes_accessed=Bp * HP * 2 + 2 * HP * 4 + HP * CP * 2 + CP * 4
                           + Bp * CP * 4),
    )(h_stash, ss, w2p, b2p)

    return out[:B, :C]


# ---------------------------------------------------------------------------
# Params & pure-JAX reference
# ---------------------------------------------------------------------------
def init_params(key, num_feature, num_class):
    """nn.Linear default init (uniform +-1/sqrt(fan_in)); BN gamma=1, beta=0."""
    k1, k2, k3, k4 = jax.random.split(key, 4)
    bound1 = 1.0 / math.sqrt(num_feature)
    w1 = jax.random.uniform(k1, (num_feature, HIDDEN), jnp.float32, -bound1, bound1)
    b1 = jax.random.uniform(k2, (HIDDEN,), jnp.float32, -bound1, bound1)
    gamma = jnp.ones((HIDDEN,), jnp.float32)
    beta = jnp.zeros((HIDDEN,), jnp.float32)
    bound2 = 1.0 / math.sqrt(HIDDEN)
    w2 = jax.random.uniform(k3, (HIDDEN, num_class), jnp.float32, -bound2, bound2)
    b2 = jax.random.uniform(k4, (num_class,), jnp.float32, -bound2, bound2)
    return (w1, b1, gamma, beta, w2, b2)


def reference_forward(x, params):
    """Pure-JAX f32 reference mirroring the PyTorch forward."""
    w1, b1, gamma, beta, w2, b2 = params
    h = x @ w1 + b1
    if x.shape[0] > 1:
        mean = jnp.mean(h, axis=0, keepdims=True)
        var = jnp.mean((h - mean) ** 2, axis=0, keepdims=True)
        h = (h - mean) / jnp.sqrt(var + BN_EPS) * gamma + beta
    h = jnp.maximum(h, 0.0)
    return h @ w2 + b2


if __name__ == "__main__":
    key = jax.random.PRNGKey(0)
    k_param, k_x, k_xt = jax.random.split(key, 3)

    B, NUM_FEATURE, NUM_CLASS = 8, 32, 5
    params = init_params(k_param, NUM_FEATURE, NUM_CLASS)
    x = jax.random.normal(k_x, (B, NUM_FEATURE), jnp.float32)

    # 1) Batch > 1, single-pass path (BatchNorm active).
    out = jax.block_until_ready(multiclass_forward(x, params))
    ref = reference_forward(x, params)
    assert out.shape == (B, NUM_CLASS)
    assert jnp.allclose(out, ref, atol=5e-2, rtol=5e-2), (
        f"mismatch vs reference, max|diff|={float(jnp.max(jnp.abs(out - ref)))}")

    # 2) Batch == 1 path (PyTorch skips BatchNorm).
    x1 = x[:1]
    out1 = jax.block_until_ready(multiclass_forward(x1, params))
    ref1 = reference_forward(x1, params)
    assert out1.shape == (1, NUM_CLASS)
    assert jnp.allclose(out1, ref1, atol=5e-2, rtol=5e-2), (
        f"mismatch (B=1) vs reference, max|diff|={float(jnp.max(jnp.abs(out1 - ref1)))}")

    # 3) Force the tiled two-call path (including a ragged last tile).
    Bt = 200
    xt = jax.random.normal(k_xt, (Bt, NUM_FEATURE), jnp.float32)
    outt = jax.block_until_ready(
        multiclass_forward(xt, params, block_rows=64, single_pass_max_bytes=0))
    reft = reference_forward(xt, params)
    assert outt.shape == (Bt, NUM_CLASS)
    assert jnp.allclose(outt, reft, atol=5e-2, rtol=5e-2), (
        f"mismatch (tiled) vs reference, max|diff|={float(jnp.max(jnp.abs(outt - reft)))}")

    print("KERNEL_OK")
</pallas_src>

<mosaic_0001>
module attributes {stable_mosaic.version = 11 : i64} {
  func.func @_single_pass_bn_kernel(%arg0: i32, %arg1: memref<8x32xf32, #tpu.memory_space<vmem>>, %arg2: memref<32x128xbf16, #tpu.memory_space<vmem>>, %arg3: memref<3x128xf32, #tpu.memory_space<vmem>>, %arg4: memref<128x128xbf16, #tpu.memory_space<vmem>>, %arg5: memref<1x128xf32, #tpu.memory_space<vmem>>, %arg6: memref<8x128xf32, #tpu.memory_space<vmem>>) attributes {dimension_semantics = [#tpu.dimension_semantics<arbitrary>], iteration_bounds = array<i64: 1>, scalar_prefetch = 0 : i64, scratch_operands = 0 : i64, tpu.core_type = #tpu.core_type<tc>, window_params = [{pipeline_mode = #tpu.pipeline_mode<synchronous>, transform_indices = @transform_0, window_bounds = array<i64: 8, 32>}, {pipeline_mode = #tpu.pipeline_mode<synchronous>, transform_indices = @transform_1, window_bounds = array<i64: 32, 128>}, {pipeline_mode = #tpu.pipeline_mode<synchronous>, transform_indices = @transform_2, window_bounds = array<i64: 3, 128>}, {pipeline_mode = #tpu.pipeline_mode<synchronous>, transform_indices = @transform_3, window_bounds = array<i64: 128, 128>}, {pipeline_mode = #tpu.pipeline_mode<synchronous>, transform_indices = @transform_4, window_bounds = array<i64: 1, 128>}, {pipeline_mode = #tpu.pipeline_mode<synchronous>, transform_indices = @transform_5, window_bounds = array<i64: 8, 128>}]} {
    %c0 = arith.constant 0 : index
    %c0_0 = arith.constant 0 : index
    %0 = vector.load %arg1[%c0, %c0_0] : memref<8x32xf32, #tpu.memory_space<vmem>>, vector<8x32xf32>
    %1 = arith.truncf %0 : vector<8x32xf32> to vector<8x32xbf16>
    %c0_1 = arith.constant 0 : index
    %c0_2 = arith.constant 0 : index
    %2 = vector.load %arg2[%c0_1, %c0_2] : memref<32x128xbf16, #tpu.memory_space<vmem>>, vector<32x128xbf16>
    %cst = arith.constant dense<0.000000e+00> : vector<8x128xf32>
    %3 = tpu.matmul %1, %2, %cst {dimension_numbers = #tpu.dot_dimension_numbers<[1], [0], [0], [1], [0, 0, 1, 1], [], []>} : vector<8x32xbf16>, vector<32x128xbf16>, vector<8x128xf32> -> vector<8x128xf32>
    %cst_3 = arith.constant dense<0.000000e+00> : vector<128xf32>
    %4 = vector.multi_reduction <add>, %3, %cst_3 [0] : vector<8x128xf32> to vector<128xf32>
    %5 = vector.shape_cast %4 : vector<128xf32> to vector<1x128xf32>
    %cst_4 = arith.constant 1.250000e-01 : f32
    %6 = vector.broadcast %cst_4 : f32 to vector<1x128xf32>
    %7 = arith.mulf %5, %6 : vector<1x128xf32>
    %8 = vector.broadcast %7 : vector<1x128xf32> to vector<8x128xf32>
    %9 = arith.subf %3, %8 : vector<8x128xf32>
    %10 = arith.mulf %9, %9 : vector<8x128xf32>
    %cst_5 = arith.constant dense<0.000000e+00> : vector<128xf32>
    %11 = vector.multi_reduction <add>, %10, %cst_5 [0] : vector<8x128xf32> to vector<128xf32>
    %12 = vector.shape_cast %11 : vector<128xf32> to vector<1x128xf32>
    %cst_6 = arith.constant 1.250000e-01 : f32
    %13 = vector.broadcast %cst_6 : f32 to vector<1x128xf32>
    %14 = arith.mulf %12, %13 : vector<1x128xf32>
    %c1 = arith.constant 1 : index
    %c0_7 = arith.constant 0 : index
    %15 = vector.load %arg3[%c1, %c0_7] : memref<3x128xf32, #tpu.memory_space<vmem>>, vector<1x128xf32>
    %cst_8 = arith.constant 9.99999974E-6 : f32
    %16 = vector.broadcast %cst_8 : f32 to vector<1x128xf32>
    %17 = arith.addf %14, %16 : vector<1x128xf32>
    %18 = math.rsqrt %17 : vector<1x128xf32>
    %19 = arith.mulf %15, %18 : vector<1x128xf32>
    %20 = vector.broadcast %19 : vector<1x128xf32> to vector<8x128xf32>
    %21 = arith.mulf %9, %20 : vector<8x128xf32>
    %c2 = arith.constant 2 : index
    %c0_9 = arith.constant 0 : index
    %22 = vector.load %arg3[%c2, %c0_9] : memref<3x128xf32, #tpu.memory_space<vmem>>, vector<1x128xf32>
    %23 = vector.broadcast %22 : vector<1x128xf32> to vector<8x128xf32>
    %24 = arith.addf %21, %23 : vector<8x128xf32>
    %cst_10 = arith.constant 0.000000e+00 : f32
    %25 = vector.broadcast %cst_10 : f32 to vector<8x128xf32>
    %26 = arith.maximumf %24, %25 : vector<8x128xf32>
    %27 = arith.truncf %26 : vector<8x128xf32> to vector<8x128xbf16>
    %c0_11 = arith.constant 0 : index
    %c0_12 = arith.constant 0 : index
    %28 = vector.load %arg4[%c0_11, %c0_12] : memref<128x128xbf16, #tpu.memory_space<vmem>>, vector<128x128xbf16>
    %cst_13 = arith.constant dense<0.000000e+00> : vector<8x128xf32>
    %29 = tpu.matmul %27, %28, %cst_13 {dimension_numbers = #tpu.dot_dimension_numbers<[1], [0], [0], [1], [0, 0, 1, 1], [], []>} : vector<8x128xbf16>, vector<128x128xbf16>, vector<8x128xf32> -> vector<8x128xf32>
    %c0_14 = arith.constant 0 : index
    %c0_15 = arith.constant 0 : index
    %30 = vector.load %arg5[%c0_14, %c0_15] : memref<1x128xf32, #tpu.memory_space<vmem>>, vector<1x128xf32>
    %31 = vector.broadcast %30 : vector<1x128xf32> to vector<8x128xf32>
    %32 = arith.addf %29, %31 : vector<8x128xf32>
    %c0_16 = arith.constant 0 : index
    %c0_17 = arith.constant 0 : index
    %33 = vector.load %arg6[%c0_16, %c0_17] : memref<8x128xf32, #tpu.memory_space<vmem>>, vector<8x128xf32>
    tpu.vector_store %arg6[%c0_16, %c0_17], %32 {strides = array<i32>} : memref<8x128xf32, #tpu.memory_space<vmem>>, vector<8x128xf32>,
    return
  }
  func.func @transform_0(%arg0: i32) -> (i32, i32) {
    %c0_i32 = arith.constant 0 : i32
    %c0_i32_0 = arith.constant 0 : i32
    %c0_i32_1 = arith.constant 0 : i32
    return %c0_i32, %c0_i32_0 : i32, i32
  }
  func.func @transform_1(%arg0: i32) -> (i32, i32) {
    %c0_i32 = arith.constant 0 : i32
    %c0_i32_0 = arith.constant 0 : i32
    %c0_i32_1 = arith.constant 0 : i32
    return %c0_i32, %c0_i32_0 : i32, i32
  }
  func.func @transform_2(%arg0: i32) -> (i32, i32) {
    %c0_i32 = arith.constant 0 : i32
    %c0_i32_0 = arith.constant 0 : i32
    %c0_i32_1 = arith.constant 0 : i32
    return %c0_i32, %c0_i32_0 : i32, i32
  }
  func.func @transform_3(%arg0: i32) -> (i32, i32) {
    %c0_i32 = arith.constant 0 : i32
    %c0_i32_0 = arith.constant 0 : i32
    %c0_i32_1 = arith.constant 0 : i32
    return %c0_i32, %c0_i32_0 : i32, i32
  }
  func.func @transform_4(%arg0: i32) -> (i32, i32) {
    %c0_i32 = arith.constant 0 : i32
    %c0_i32_0 = arith.constant 0 : i32
    %c0_i32_1 = arith.constant 0 : i32
    return %c0_i32, %c0_i32_0 : i32, i32
  }
  func.func @transform_5(%arg0: i32) -> (i32, i32) {
    %c0_i32 = arith.constant 0 : i32
    %c0_i32_0 = arith.constant 0 : i32
    %c0_i32_1 = arith.constant 0 : i32
    return %c0_i32, %c0_i32_0 : i32, i32
  }
}

</mosaic_0001>

<llo_original>
// kernel: tpu_custom_call.1
$region0: #{tpu_custom_call.1}
  #allocation0 [shape = 'u32[]', space=smem, size = 0x4, offset = 0x4, fixed_abs, tag = 'smem constant byte address 0x4 - core index']
  #allocation1 [shape = 'u32[72,128]{1,0:T(1,128)}', space=vmem, size = 0x9000, scoped, tag = 'internal scratch']
  %s0 = inlined_call_operand.hbm [shape: f32[8,32], index: 0, kind: input, shape index: {}]
  %s1 = inlined_call_operand.hbm [shape: bf16[32,128], index: 1, kind: input, shape index: {}]
  %s2 = inlined_call_operand.hbm [shape: f32[3,128], index: 2, kind: input, shape index: {}]
  %s3 = inlined_call_operand.hbm [shape: bf16[128,128], index: 3, kind: input, shape index: {}]
  %s4 = inlined_call_operand.vmem [shape: f32[1,128], index: 4, kind: input, shape index: {}]
  %s5 = inlined_call_operand.hbm [shape: f32[8,128], index: 5, kind: output, shape index: {}]
  %s6 = sld [smem:[#allocation0]]
  $region46: #{tpu_custom_call.1} parent=0
    _
  %s8 = ssub.s32 1, %s6
  %s9 = scalar_select 0, %s8, %s6
  $region1: #{tpu_custom_call.1} parent=0
    #allocation2 [shape = 'u8[4096]{0}', space=vmem, size = 0x1000, scoped, tag = 'input window, operand 0, single buffered']
    #allocation3 [shape = 's32[1]{0}', space=sflag, size = 0x4, scoped, tag = 'scoped memory for tpu_custom_call.1']
    #allocation4 [shape = 's32[1]{0}', space=sflag, size = 0x4, scoped, tag = 'scoped memory for tpu_custom_call.1']
    #allocation5 [shape = 'u8[8192]{0}', space=vmem, size = 0x2000, scoped, tag = 'input window, operand 1, single buffered']
    #allocation6 [shape = 's32[1]{0}', space=sflag, size = 0x4, scoped, tag = 'scoped memory for tpu_custom_call.1']
    #allocation7 [shape = 'u8[2048]{0}', space=vmem, size = 0x800, scoped, tag = 'input window, operand 2, single buffered']
    #allocation8 [shape = 'u8[32768]{0}', space=vmem, size = 0x8000, scoped, tag = 'input window, operand 3, single buffered']
    #allocation9 [shape = 's32[1]{0}', space=sflag, size = 0x4, scoped, tag = 'scoped memory for tpu_custom_call.1']
    #allocation10 [shape = 'u8[4096]{0}', space=vmem, size = 0x1000, scoped, tag = 'output window, operand 0, single buffered']
    %10 = vsyncpa [#allocation3], 0
    %11 = vsyncpa [#allocation6], 0
    %12 = vsyncpa [#allocation9], 0
    %13 = vsyncpa [#allocation4], 0
    // Predicated region
    $region2: #{tpu_custom_call.1} parent=1 // pred_check
      _
    $region3: #{tpu_custom_call.1} parent=1 // pred_check_branch
      %15 = sbr.rel (0) target = $region5
    $region4: #{tpu_custom_call.1} parent=1 // pred_region
      %17 = vsyncadd [#allocation3], 0
      %s19 = sshll.u32 %s0, 4
      %s20 = int_to_ptr.hbm [resolvable:$true] %s19
      %s21 = sshll.u32 [#allocation2], 4
      %s22 = int_to_ptr.vmem [resolvable:$true] %s21
      %24 = dma.hbm_to_vmem [thread:$0]  %s20, 128, %s22, [#allocation3]
    $region5: #{tpu_custom_call.1} parent=1 // pred_fallthru
      _
    // Predicated region
    $region6: #{tpu_custom_call.1} parent=1 // pred_check
      _
    $region7: #{tpu_custom_call.1} parent=1 // pred_check_branch
      %26 = sbr.rel (0) target = $region9
    $region8: #{tpu_custom_call.1} parent=1 // pred_region
      %28 = vsyncadd [#allocation6], 0
      %s29 = sshll.u32 %s1, 4
      %s30 = int_to_ptr.hbm [resolvable:$true] %s29
      %s31 = sshll.u32 [#allocation5], 4
      %s32 = int_to_ptr.vmem [resolvable:$true] %s31
      %37 = dma.hbm_to_vmem [thread:$0]  %s30, 256, %s32, [#allocation6], 64, 64, 4
    $region9: #{tpu_custom_call.1} parent=1 // pred_fallthru
      _
    // Predicated region
    $region10: #{tpu_custom_call.1} parent=1 // pred_check
      _
    $region11: #{tpu_custom_call.1} parent=1 // pred_check_branch
      %39 = sbr.rel (0) target = $region13
    $region12: #{tpu_custom_call.1} parent=1 // pred_region
      %41 = vsyncadd [#allocation6], 0
      %s43 = sshll.u32 %s2, 4
      %s44 = int_to_ptr.hbm [resolvable:$true] %s43
      %s45 = sshll.u32 [#allocation7], 4
      %s46 = int_to_ptr.vmem [resolvable:$true] %s45
      %48 = dma.hbm_to_vmem [thread:$0]  %s44, 64, %s46, [#allocation6]
    $region13: #{tpu_custom_call.1} parent=1 // pred_fallthru
      _
    // Predicated region
    $region14: #{tpu_custom_call.1} parent=1 // pred_check
      _
    $region15: #{tpu_custom_call.1} parent=1 // pred_check_branch
      %50 = sbr.rel (0) target = $region17
    $region16: #{tpu_custom_call.1} parent=1 // pred_region
      %52 = vsyncadd [#allocation9], 0
      %s53 = sshll.u32 %s3, 4
      %s54 = int_to_ptr.hbm [resolvable:$true] %s53
      %s55 = sshll.u32 [#allocation8], 4
      %s56 = int_to_ptr.vmem [resolvable:$true] %s55
      %61 = dma.hbm_to_vmem [thread:$0]  %s54, 1024, %s56, [#allocation9], 64, 64, 4
    $region17: #{tpu_custom_call.1} parent=1 // pred_fallthru
      _
    // Predicated region
    $region18: #{tpu_custom_call.1} parent=1 // pred_check
      _
    $region19: #{tpu_custom_call.1} parent=1 // pred_check_branch
      %63 = sbr.rel (0) target = $region21
    $region20: #{tpu_custom_call.1} parent=1 // pred_region
      _
    $region21: #{tpu_custom_call.1} parent=1 // pred_fallthru
      _
    // Predicated region
    $region22: #{tpu_custom_call.1} parent=1 // pred_check
      _
    $region23: #{tpu_custom_call.1} parent=1 // pred_check_branch
      %65 = sbr.rel (0) target = $region25
    $region24: #{tpu_custom_call.1} parent=1 // pred_region
      %67 = dma.done [#allocation3], 128
    $region25: #{tpu_custom_call.1} parent=1 // pred_fallthru
      _
    // Predicated region
    $region26: #{tpu_custom_call.1} parent=1 // pred_check
      _
    $region27: #{tpu_custom_call.1} parent=1 // pred_check_branch
      %69 = sbr.rel (0) target = $region29
    $region28: #{tpu_custom_call.1} parent=1 // pred_region
      %71 = dma.done [#allocation6], 256
    $region29: #{tpu_custom_call.1} parent=1 // pred_fallthru
      _
    // Predicated region
    $region30: #{tpu_custom_call.1} parent=1 // pred_check
      _
    $region31: #{tpu_custom_call.1} parent=1 // pred_check_branch
      %73 = sbr.rel (0) target = $region33
    $region32: #{tpu_custom_call.1} parent=1 // pred_region
      %75 = dma.done [#allocation6], 64
    $region33: #{tpu_custom_call.1} parent=1 // pred_fallthru
      _
    // Predicated region
    $region34: #{tpu_custom_call.1} parent=1 // pred_check
      _
    $region35: #{tpu_custom_call.1} parent=1 // pred_check_branch
      %77 = sbr.rel (0) target = $region37
    $region36: #{tpu_custom_call.1} parent=1 // pred_region
      %79 = dma.done [#allocation9], 1024
    $region37: #{tpu_custom_call.1} parent=1 // pred_fallthru
      _
    %v81 = vld [vmem:[#allocation2] sm:$0xff]
    %v82 = vpack.c.bf16 %v81, %v81
    %v83 = vld [vmem:[#allocation5] sm:$0xf]
    %v84 = vld [vmem:[#allocation5 + $0x4] sm:$0xf]
    %v85 = vld [vmem:[#allocation5 + $0x8] sm:$0xf]
    %v86 = vld [vmem:[#allocation5 + $0xc] sm:$0xf]
    %v91 = vunpack.c.l.b16 %v83
    %v92 = vunpack.c.l.b16 %v84
    %v93 = vunpack.c.l.b16 %v85
    %v94 = vunpack.c.l.b16 %v86
    %v95 = vpack.c.b16 %v92, %v91
    %v96 = vpack.c.b16 %v94, %v93
    %vm99 = vcmask 261120
    %v101 = vsel %vm99, %v82, 0
    %103 = vmatpush.bf16.msra.mxu0 0
    %104 = vmatpush.bf16.msra.mxu0 0
    %105 = vmatpush.bf16.msra.mxu0 0
    %106 = vmatpush.bf16.msra.mxu0 0
    %107 = vmatpush.bf16.msra.mxu0 0
    %108 = vmatpush.bf16.msra.mxu0 0
    %109 = vmatpush.bf16.msra.mxu0 %v96
    %110 = vmatpush.bf16.msra.mxu0 %v95
    %111 = vmatmul.bf16.gmra.mxu0 %v101
    %v112 = vpop.f32.mrf.mxu0
    %v113 = vadd.f32 0.0, %v112
    %v114 = vpop.f32.mrf.mxu0
    %115 = vdwg.mxu0
    %v116 = vrot.slane %v113, 4
    %v117 = vadd.f32 %v113, %v116
    %v118 = vrot.slane %v117, 2
    %v119 = vadd.f32 %v117, %v118
    %v120 = vrot.slane %v119, 1
    %v121 = vadd.f32 %v119, %v120
    %v122 = vmul.f32 %v121, 0.125
    %v123 = vsub.f32 %v113, %v122
    %v124 = vmul.f32 %v123, %v123
    %v125 = vrot.slane %v124, 4
    %v126 = vadd.f32 %v124, %v125
    %v127 = vrot.slane %v126, 2
    %v128 = vadd.f32 %v126, %v127
    %v129 = vrot.slane %v128, 1
    %v130 = vadd.f32 %v128, %v129
    %v131 = vmul.f32 %v130, 0.125
    %v132 = vld [vmem:[#allocation7 + $0x1] sm:$0x1]
    %v133 = vadd.f32 %v131, 1e-05
    %v134 = vrsqrt.pop %v133
    %v135 = vmul.f32 %v134, %v133
    %v136 = vmul.f32 %v135, %v134
    %v137 = vmul.f32 0.5, %v136
    %v138 = vsub.f32 1.5, %v137
    %v139 = vmul.f32 %v134, %v138
    %vm140 = vweird.f32 %v133
    %vm141 = vweird.f32 %v134
    %vm142 = vmor %vm140, %vm141
    %v143 = vsel %vm142, %v134, %v139
    %v144 = vmul.f32 %v132, %v143
    %v145 = vperm.slane %v144, 0
    %v146 = vmul.f32 %v123, %v145
    %v147 = vld [vmem:[#allocation7 + $0x2] sm:$0x1]
    %v148 = vperm.slane %v147, 0
    %v149 = vadd.f32 %v146, %v148
    %v150 = vmax.f32 %v149, 0.0
    %v151 = vpack.c.bf16 %v150, %v150
    %v152 = vld [vmem:[#allocation8] sm:$0xf]
    %v153 = vld [vmem:[#allocation8 + $0x4] sm:$0xf]
    %v154 = vld [vmem:[#allocation8 + $0x8] sm:$0xf]
    %v155 = vld [vmem:[#allocation8 + $0xc] sm:$0xf]
    %v156 = vld [vmem:[#allocation8 + $0x10] sm:$0xf]
    %v157 = vld [vmem:[#allocation8 + $0x14] sm:$0xf]
    %v158 = vld [vmem:[#allocation8 + $0x18] sm:$0xf]
    %v159 = vld [vmem:[#allocation8 + $0x1c] sm:$0xf]
    %v160 = vld [vmem:[#allocation8 + $0x20] sm:$0xf]
    %v161 = vld [vmem:[#allocation8 + $0x24] sm:$0xf]
    %v162 = vld [vmem:[#allocation8 + $0x28] sm:$0xf]
    %v163 = vld [vmem:[#allocation8 + $0x2c] sm:$0xf]
    %v164 = vld [vmem:[#allocation8 + $0x30] sm:$0xf]
    %v165 = vld [vmem:[#allocation8 + $0x34] sm:$0xf]
    %v166 = vld [vmem:[#allocation8 + $0x38] sm:$0xf]
    %v167 = vld [vmem:[#allocation8 + $0x3c] sm:$0xf]
    %v168 = vld [vmem:[%s4] sm:$0x1]
    %v170 = vperm.slane %v168, 0
    %v188 = vunpack.c.l.b16 %v152
    %v189 = vunpack.c.l.b16 %v153
    %v190 = vunpack.c.l.b16 %v154
    %v191 = vunpack.c.l.b16 %v155
    %v192 = vunpack.c.l.b16 %v156
    %v193 = vunpack.c.l.b16 %v157
    %v194 = vunpack.c.l.b16 %v158
    %v195 = vunpack.c.l.b16 %v159
    %v196 = vunpack.c.l.b16 %v160
    %v197 = vunpack.c.l.b16 %v161
    %v198 = vunpack.c.l.b16 %v162
    %v199 = vunpack.c.l.b16 %v163
    %v200 = vunpack.c.l.b16 %v164
    %v201 = vunpack.c.l.b16 %v165
    %v202 = vunpack.c.l.b16 %v166
    %v203 = vunpack.c.l.b16 %v167
    %v204 = vpack.c.b16 %v189, %v188
    %v205 = vpack.c.b16 %v191, %v190
    %v206 = vpack.c.b16 %v193, %v192
    %v207 = vpack.c.b16 %v195, %v194
    %v208 = vpack.c.b16 %v197, %v196
    %v209 = vpack.c.b16 %v199, %v198
    %v210 = vpack.c.b16 %v201, %v200
    %v211 = vpack.c.b16 %v203, %v202
    %220 = vmatpush.bf16.msra.mxu0 %v211
    %221 = vmatpush.bf16.msra.mxu0 %v210
    %222 = vmatpush.bf16.msra.mxu0 %v209
    %223 = vmatpush.bf16.msra.mxu0 %v208
    %224 = vmatpush.bf16.msra.mxu0 %v207
    %225 = vmatpush.bf16.msra.mxu0 %v206
    %226 = vmatpush.bf16.msra.mxu0 %v205
    %227 = vmatpush.bf16.msra.mxu0 %v204
    %228 = vmatmul.bf16.gmra.mxu0 %v151
    %v229 = vpop.f32.mrf.mxu0
    %v230 = vadd.f32 %v170, %v229
    %v231 = vpop.f32.mrf.mxu0
    %232 = vdwg.mxu0
    %233 = vst [vmem:[#allocation10] sm:$0xff] %v230
    // Predicated region
    $region38: #{tpu_custom_call.1} parent=1 // pred_check
      _
    $region39: #{tpu_custom_call.1} parent=1 // pred_check_branch
      %235 = sbr.rel (0) target = $region41
    $region40: #{tpu_custom_call.1} parent=1 // pred_region
      %237 = vsyncadd [#allocation4], 0
      %s239 = sshll.u32 [#allocation10], 4
      %s240 = int_to_ptr.vmem [resolvable:$true] %s239
      %s241 = sshll.u32 %s5, 4
      %s242 = int_to_ptr.hbm [resolvable:$true] %s241
      %244 = dma.vmem_to_hbm [thread:$0]  %s240, 128, %s242, [#allocation4]
    $region41: #{tpu_custom_call.1} parent=1 // pred_fallthru
      _
    // Predicated region
    $region42: #{tpu_custom_call.1} parent=1 // pred_check
      _
    $region43: #{tpu_custom_call.1} parent=1 // pred_check_branch
      %246 = sbr.rel (0) target = $region45
    $region44: #{tpu_custom_call.1} parent=1 // pred_region
      %248 = dma.done [#allocation4], 128
    $region45: #{tpu_custom_call.1} parent=1 // pred_fallthru
      _
    %249 = vsyncpa [#allocation3], 1
    %250 = vsyncpa [#allocation6], 1
    %251 = vsyncpa [#allocation9], 1
    %252 = vsyncpa [#allocation4], 1

</llo_original>
